<compile_context>
chip_gen: v5e
topology: v5e:2x2
jax: 0.10.0
libtpu: 0.0.40
codegen_flags: <defaults>
</compile_context>

<pallas_src>
import functools

import jax
import jax.numpy as jnp
from jax.experimental import pallas as pl
from jax.experimental.pallas import tpu as pltpu

_BN_EPS = 1e-5
_TM = 256                                  # rows (N*H*W) per tile
_VMEM_LIMIT = 48 * 1024 * 1024             # <= 64 MiB physical VMEM on v7x

_VMEM_SPEC = pl.BlockSpec(memory_space=pltpu.MemorySpace.VMEM)
_GRID1_PARAMS = pltpu.CompilerParams(
    dimension_semantics=("parallel",), vmem_limit_bytes=_VMEM_LIMIT)
_GRID0_PARAMS = pltpu.CompilerParams(vmem_limit_bytes=_VMEM_LIMIT)


# --------------------------------------------------------------------------
# Pallas kernels
# --------------------------------------------------------------------------
def _matmul_stats_kernel(x_ref, w_ref, y_ref, stats_ref):
    # x: (TM, K) bf16, w: (K, Cout) bf16  -> y tile (bf16) + per-tile col sum/sumsq (f32)
    y = jnp.dot(x_ref[...], w_ref[...], preferred_element_type=jnp.float32)
    y_ref[...] = y.astype(y_ref.dtype)
    stats_ref[0:1, :] = jnp.sum(y, axis=0, keepdims=True)
    stats_ref[1:2, :] = jnp.sum(y * y, axis=0, keepdims=True)


def _bn_act_kernel(y_ref, stats_ref, g_ref, b_ref, o_ref, *, relu, inv_m):
    # Global batch-stat BN (training mode) + optional ReLU, epilogue in f32.
    tot = jnp.sum(stats_ref[...], axis=0)                    # (2, Cout)
    mean = tot[0:1, :] * inv_m
    var = jnp.maximum(tot[1:2, :] * inv_m - mean * mean, 0.0)
    scale = jax.lax.rsqrt(var + _BN_EPS) * g_ref[...]
    shift = b_ref[...] - mean * scale
    y = y_ref[...].astype(jnp.float32) * scale + shift
    if relu:
        y = jnp.maximum(y, 0.0)
    o_ref[...] = y.astype(o_ref.dtype)


def _bn_add_relu_kernel(y_ref, stats_ref, g_ref, b_ref, r_ref, o_ref, *, inv_m):
    # BN + residual add + ReLU (bottleneck tail).  ReLU is ALWAYS applied after the add.
    tot = jnp.sum(stats_ref[...], axis=0)
    mean = tot[0:1, :] * inv_m
    var = jnp.maximum(tot[1:2, :] * inv_m - mean * mean, 0.0)
    scale = jax.lax.rsqrt(var + _BN_EPS) * g_ref[...]
    shift = b_ref[...] - mean * scale
    y = (y_ref[...].astype(jnp.float32) * scale + shift
         + r_ref[...].astype(jnp.float32))
    o_ref[...] = jnp.maximum(y, 0.0).astype(o_ref.dtype)


def _max9_kernel(*refs):
    # 9 shifted window views of shape (TM, C); elementwise max = 3x3 max pool
    o_ref = refs[-1]
    m = refs[0][...]
    for r in refs[1:-1]:
        m = jnp.maximum(m, r[...])
    o_ref[...] = m


def _avgpool_kernel(x_ref, o_ref):
    # x: (N, H*W, C) -> (N, C)   == F.avg_pool2d(x, x.shape[2:]).view(N, -1)
    o_ref[...] = jnp.mean(x_ref[...].astype(jnp.float32), axis=1)


def _linear_kernel(x_ref, w_ref, b_ref, o_ref):
    o_ref[...] = jnp.dot(x_ref[...], w_ref[...],
                         preferred_element_type=jnp.float32) + b_ref[...]


# --------------------------------------------------------------------------
# Tiling helpers + pallas_call wrappers
# --------------------------------------------------------------------------
def _row_tiling(m):
    """Tile size and padded row count for a (M, C) slab."""
    if m <= _TM:
        return m, m
    m_pad = ((m + _TM - 1) // _TM) * _TM
    return _TM, m_pad


def _conv_bn_impl(x2d, w, gamma, beta, relu, residual):
    x2d = x2d.astype(jnp.bfloat16)
    w = w.astype(jnp.bfloat16)
    m, k = x2d.shape
    cout = w.shape[1]
    tm, m_pad = _row_tiling(m)
    if m_pad != m:
        # zero rows contribute 0 to sum/sumsq, and mean/var divide by the TRUE m,
        # so global BN statistics are unaffected by padding.
        x2d = jnp.pad(x2d, ((0, m_pad - m), (0, 0)))
        if residual is not None:
            residual = jnp.pad(residual, ((0, m_pad - m), (0, 0)))
    nmt = m_pad // tm

    x_spec = pl.BlockSpec((tm, k), lambda i: (i, 0))
    w_spec = pl.BlockSpec((k, cout), lambda i: (0, 0))
    y_spec = pl.BlockSpec((tm, cout), lambda i: (i, 0))        # lane-dense (full Cout)
    st_out_spec = pl.BlockSpec((None, 2, cout), lambda i: (i, 0, 0))

    cost1 = pl.CostEstimate(
        flops=2 * m_pad * k * cout, transcendentals=0,
        bytes_accessed=m_pad * k * 2 + k * cout * 2 + m_pad * cout * 2
        + nmt * 2 * cout * 4)
    y, stats = pl.pallas_call(
        _matmul_stats_kernel,
        out_shape=(jax.ShapeDtypeStruct((m_pad, cout), jnp.bfloat16),
                   jax.ShapeDtypeStruct((nmt, 2, cout), jnp.float32)),
        grid=(nmt,),
        in_specs=[x_spec, w_spec],
        out_specs=(y_spec, st_out_spec),
        compiler_params=_GRID1_PARAMS,
        cost_estimate=cost1,
    )(x2d, w)

    g2 = gamma.reshape(1, cout).astype(jnp.float32)
    b2 = beta.reshape(1, cout).astype(jnp.float32)
    st_in_spec = pl.BlockSpec((nmt, 2, cout), lambda i: (0, 0, 0))
    vec_spec = pl.BlockSpec((1, cout), lambda i: (0, 0))
    inv_m = 1.0 / float(m)

    if residual is None:
        kern = functools.partial(_bn_act_kernel, relu=relu, inv_m=inv_m)
        operands = (y, stats, g2, b2)
        in_specs = [y_spec, st_in_spec, vec_spec, vec_spec]
    else:
        kern = functools.partial(_bn_add_relu_kernel, inv_m=inv_m)
        operands = (y, stats, g2, b2, residual.astype(jnp.bfloat16))
        in_specs = [y_spec, st_in_spec, vec_spec, vec_spec, y_spec]

    cost2 = pl.CostEstimate(
        flops=6 * m_pad * cout, transcendentals=cout,
        bytes_accessed=2 * (m_pad * cout * 2) + nmt * 2 * cout * 4)
    out = pl.pallas_call(
        kern,
        out_shape=jax.ShapeDtypeStruct((m_pad, cout), jnp.bfloat16),
        grid=(nmt,),
        in_specs=in_specs,
        out_specs=y_spec,
        compiler_params=_GRID1_PARAMS,
        cost_estimate=cost2,
    )(*operands)
    if m_pad != m:
        out = out[:m]
    return out


def conv_bn(x2d, w, gamma, beta, *, relu):
    """conv (as matmul) + training-mode BN (+ optional ReLU).  Output bf16."""
    return _conv_bn_impl(x2d, w, gamma, beta, relu=relu, residual=None)


def conv_bn_add_relu(x2d, w, gamma, beta, residual):
    """conv + BN + residual add + ReLU (ReLU always applied after the add)."""
    return _conv_bn_impl(x2d, w, gamma, beta, relu=True, residual=residual)


def _im2col(x, kh, kw, stride, pad):
    # x: (N, H, W, C) NHWC -> patches (N*Ho*Wo, kh*kw*C), (i, j, c) ordering, bf16.
    # TODO(synk): replace with in-kernel 3x3 tap accumulation (9 shifted matmuls over
    # the padded feature map) to avoid materializing the 9x patch slab in HBM.
    n, h, w, c = x.shape
    xp = jnp.pad(x, ((0, 0), (pad, pad), (pad, pad), (0, 0)))
    ho = (h + 2 * pad - kh) // stride + 1
    wo = (w + 2 * pad - kw) // stride + 1
    cols = []
    for i in range(kh):
        for j in range(kw):
            cols.append(xp[:, i:i + (ho - 1) * stride + 1:stride,
                           j:j + (wo - 1) * stride + 1:stride, :])
    patches = jnp.concatenate(cols, axis=-1)
    return patches.reshape(n * ho * wo, kh * kw * c).astype(jnp.bfloat16), ho, wo


def _maxpool_3x3_s2(x):
    # MaxPool2d(kernel_size=3, stride=2, padding=1), padding value = -inf
    # TODO(synk): take the 9 strided windows inside the kernel from one padded map
    # instead of materializing 9 window arrays in XLA.
    n, h, w, c = x.shape
    xp = jnp.pad(x, ((0, 0), (1, 1), (1, 1), (0, 0)), constant_values=-jnp.inf)
    ho = (h + 2 - 3) // 2 + 1
    wo = (w + 2 - 3) // 2 + 1
    windows = []
    for i in range(3):
        for j in range(3):
            win = xp[:, i:i + (ho - 1) * 2 + 1:2, j:j + (wo - 1) * 2 + 1:2, :]
            windows.append(win.reshape(n * ho * wo, c))
    m = n * ho * wo
    tm, m_pad = _row_tiling(m)
    if m_pad != m:
        windows = [jnp.pad(wv, ((0, m_pad - m), (0, 0))) for wv in windows]
    nmt = m_pad // tm
    spec = pl.BlockSpec((tm, c), lambda i: (i, 0))
    out = pl.pallas_call(
        _max9_kernel,
        out_shape=jax.ShapeDtypeStruct((m_pad, c), x.dtype),
        grid=(nmt,),
        in_specs=[spec] * 9,
        out_specs=spec,
        compiler_params=_GRID1_PARAMS,
    )(*windows)
    if m_pad != m:
        out = out[:m]
    return out.reshape(n, ho, wo, c)


def _global_avg_pool(x):
    n, h, w, c = x.shape
    return pl.pallas_call(
        _avgpool_kernel,
        out_shape=jax.ShapeDtypeStruct((n, c), jnp.float32),
        in_specs=[_VMEM_SPEC], out_specs=_VMEM_SPEC,
        compiler_params=_GRID0_PARAMS,
    )(x.reshape(n, h * w, c))


def _linear(x, w, b):
    n, kin = x.shape
    c = w.shape[1]
    return pl.pallas_call(
        _linear_kernel,
        out_shape=jax.ShapeDtypeStruct((n, c), jnp.float32),
        in_specs=[_VMEM_SPEC] * 3, out_specs=_VMEM_SPEC,
        compiler_params=_GRID0_PARAMS,
        cost_estimate=pl.CostEstimate(
            flops=2 * n * kin * c, transcendentals=0,
            bytes_accessed=n * kin * 2 + kin * c * 2 + n * c * 4),
    )(x.astype(jnp.bfloat16), w.astype(jnp.bfloat16), b.reshape(1, c))


# --------------------------------------------------------------------------
# Deterministic synthetic parameters (shapes of torchvision resnet50)
# --------------------------------------------------------------------------
class _ParamGen:
    def __init__(self, seed):
        self._key = jax.random.PRNGKey(seed)

    def normal(self, shape, scale):
        self._key, sub = jax.random.split(self._key)
        return scale * jax.random.normal(sub, shape, dtype=jnp.float32)


def _bn_params(pg, c):
    return 1.0 + pg.normal((c,), 0.1), pg.normal((c,), 0.1)


def _bottleneck_params(pg, inplanes, planes, stride, downsample):
    # conv weights stored directly in matmul layout (kh*kw*Cin, Cout) as bf16.
    p = {'stride': stride}
    p['w1'] = pg.normal((inplanes, planes), 0.05).astype(jnp.bfloat16)      # 1x1
    p['g1'], p['b1'] = _bn_params(pg, planes)
    p['w2'] = pg.normal((9 * planes, planes), 0.05).astype(jnp.bfloat16)    # 3x3
    p['g2'], p['b2'] = _bn_params(pg, planes)
    p['w3'] = pg.normal((planes, 4 * planes), 0.05).astype(jnp.bfloat16)    # 1x1
    p['g3'], p['b3'] = _bn_params(pg, 4 * planes)
    if downsample:
        p['wd'] = pg.normal((inplanes, 4 * planes), 0.05).astype(jnp.bfloat16)
        p['gd'], p['bd'] = _bn_params(pg, 4 * planes)
    return p


def make_resnet50_params(num_classes, seed=0):
    pg = _ParamGen(seed)
    params = {}
    params['conv1_w'] = pg.normal((7 * 7 * 3, 64), 0.05).astype(jnp.bfloat16)
    params['bn1_g'], params['bn1_b'] = _bn_params(pg, 64)
    inplanes = 64
    for name, planes, blocks, stride in (('layer1', 64, 3, 1),
                                         ('layer2', 128, 4, 2),
                                         ('layer3', 256, 6, 2),
                                         ('layer4', 512, 3, 2)):
        layer = [_bottleneck_params(pg, inplanes, planes, stride, True)]
        inplanes = 4 * planes
        for _ in range(blocks - 1):
            layer.append(_bottleneck_params(pg, inplanes, planes, 1, False))
        params[name] = layer
    params['fc_w'] = pg.normal((2048, num_classes), 0.02).astype(jnp.bfloat16)
    params['fc_b'] = jnp.zeros((num_classes,), dtype=jnp.float32)
    return params


# --------------------------------------------------------------------------
# Forward pass
# --------------------------------------------------------------------------
def _bottleneck_forward(x, p):
    n, h, w, cin = x.shape
    stride = p['stride']
    planes = p['w1'].shape[1]
    if 'wd' in p:
        # TODO(synk): fold the shortcut's spatial stride into the wd conv's BlockSpec
        # index_map instead of an XLA strided slice.
        xs = x[:, ::stride, ::stride, :]
        identity = conv_bn(xs.reshape(-1, cin), p['wd'], p['gd'], p['bd'],
                           relu=False)
    else:
        identity = x.reshape(-1, cin)
    out = conv_bn(x.reshape(-1, cin), p['w1'], p['g1'], p['b1'], relu=True)
    out = out.reshape(n, h, w, planes)
    patches, ho, wo = _im2col(out, 3, 3, stride, 1)
    out = conv_bn(patches, p['w2'], p['g2'], p['b2'], relu=True)
    out = conv_bn_add_relu(out, p['w3'], p['g3'], p['b3'], identity)
    return out.reshape(n, ho, wo, 4 * planes)


def resnet50_forward(x_nchw, params):
    """Training-mode forward (aligned=False, loss='softmax_cent') -> (y, f)."""
    x = jnp.transpose(x_nchw, (0, 2, 3, 1)).astype(jnp.bfloat16)   # NCHW -> NHWC
    n = x.shape[0]
    # stem: conv7x7/2 + BN + ReLU + maxpool3x3/2
    patches, ho, wo = _im2col(x, 7, 7, 2, 3)
    out = conv_bn(patches, params['conv1_w'], params['bn1_g'], params['bn1_b'],
                  relu=True)
    out = _maxpool_3x3_s2(out.reshape(n, ho, wo, 64))
    # residual stages
    for name in ('layer1', 'layer2', 'layer3', 'layer4'):
        for blk in params[name]:
            out = _bottleneck_forward(out, blk)
    # F.avg_pool2d(x, x.shape[2:]) ; f = x.view(N, -1) ; y = classifier(f)
    f = _global_avg_pool(out)                                   # (N, 2048) f32
    y = _linear(f, params['fc_w'], params['fc_b'])              # (N, num_classes)
    return y, f
    # TODO(synk): eval/aligned branch (HorizontalPooling + per-stripe l2-norm)
    # not exercised by the default training-mode forward implemented here.


if __name__ == "__main__":
    num_classes = 16
    batch, cin, spatial = 2, 3, 64
    key = jax.random.PRNGKey(0)
    x = jax.random.normal(key, (batch, cin, spatial, spatial), dtype=jnp.float32)
    params = make_resnet50_params(num_classes, seed=0)
    y, f = resnet50_forward(x, params)
    jax.block_until_ready((y, f))
    assert y.shape == (batch, num_classes) and f.shape == (batch, 2048)
    assert bool(jnp.all(jnp.isfinite(y))) and bool(jnp.all(jnp.isfinite(f)))
    print("KERNEL_OK")
</pallas_src>

<mosaic_0001>
module attributes {stable_mosaic.version = 11 : i64} {
  func.func @_matmul_stats_kernel(%arg0: i32, %arg1: memref<256x147xbf16, #tpu.memory_space<vmem>>, %arg2: memref<147x64xbf16, #tpu.memory_space<vmem>>, %arg3: memref<256x64xbf16, #tpu.memory_space<vmem>>, %arg4: memref<1x2x64xf32, #tpu.memory_space<vmem>>) attributes {dimension_semantics = [#tpu.dimension_semantics<parallel>], iteration_bounds = array<i64: 8>, scalar_prefetch = 0 : i64, scratch_operands = 0 : i64, tpu.core_type = #tpu.core_type<tc>, window_params = [{transform_indices = @transform_0, window_bounds = array<i64: 256, 147>}, {pipeline_mode = #tpu.pipeline_mode<synchronous>, transform_indices = @transform_1, window_bounds = array<i64: 147, 64>}, {transform_indices = @transform_2, window_bounds = array<i64: 256, 64>}, {transform_indices = @transform_3, window_bounds = array<i64: 1, 2, 64>}]} {
    %c0 = arith.constant 0 : index
    %c0_0 = arith.constant 0 : index
    %0 = vector.load %arg1[%c0, %c0_0] : memref<256x147xbf16, #tpu.memory_space<vmem>>, vector<256x147xbf16>
    %c0_1 = arith.constant 0 : index
    %c0_2 = arith.constant 0 : index
    %1 = vector.load %arg2[%c0_1, %c0_2] : memref<147x64xbf16, #tpu.memory_space<vmem>>, vector<147x64xbf16>
    %cst = arith.constant dense<0.000000e+00> : vector<256x64xf32>
    %2 = tpu.matmul %0, %1, %cst {dimension_numbers = #tpu.dot_dimension_numbers<[1], [0], [0], [1], [0, 0, 1, 1], [], []>} : vector<256x147xbf16>, vector<147x64xbf16>, vector<256x64xf32> -> vector<256x64xf32>
    %3 = arith.truncf %2 : vector<256x64xf32> to vector<256x64xbf16>
    %c0_3 = arith.constant 0 : index
    %c0_4 = arith.constant 0 : index
    %4 = vector.load %arg3[%c0_3, %c0_4] : memref<256x64xbf16, #tpu.memory_space<vmem>>, vector<256x64xbf16>
    tpu.vector_store %arg3[%c0_3, %c0_4], %3 {strides = array<i32>} : memref<256x64xbf16, #tpu.memory_space<vmem>>, vector<256x64xbf16>,
    %cst_5 = arith.constant dense<0.000000e+00> : vector<64xf32>
    %5 = vector.multi_reduction <add>, %2, %cst_5 [0] : vector<256x64xf32> to vector<64xf32>
    %6 = vector.shape_cast %5 : vector<64xf32> to vector<1x64xf32>
    %c0_6 = arith.constant 0 : index
    %c0_7 = arith.constant 0 : index
    %c0_8 = arith.constant 0 : index
    %7 = vector.load %arg4[%c0_6, %c0_7, %c0_8] : memref<1x2x64xf32, #tpu.memory_space<vmem>>, vector<1x1x64xf32>
    %8 = vector.shape_cast %7 : vector<1x1x64xf32> to vector<1x64xf32>
    %9 = vector.shape_cast %6 : vector<1x64xf32> to vector<1x1x64xf32>
    tpu.vector_store %arg4[%c0_6, %c0_7, %c0_8], %9 {strides = array<i32>} : memref<1x2x64xf32, #tpu.memory_space<vmem>>, vector<1x1x64xf32>,
    %10 = arith.mulf %2, %2 : vector<256x64xf32>
    %cst_9 = arith.constant dense<0.000000e+00> : vector<64xf32>
    %11 = vector.multi_reduction <add>, %10, %cst_9 [0] : vector<256x64xf32> to vector<64xf32>
    %12 = vector.shape_cast %11 : vector<64xf32> to vector<1x64xf32>
    %c0_10 = arith.constant 0 : index
    %c1 = arith.constant 1 : index
    %c0_11 = arith.constant 0 : index
    %13 = vector.load %arg4[%c0_10, %c1, %c0_11] : memref<1x2x64xf32, #tpu.memory_space<vmem>>, vector<1x1x64xf32>
    %14 = vector.shape_cast %13 : vector<1x1x64xf32> to vector<1x64xf32>
    %15 = vector.shape_cast %12 : vector<1x64xf32> to vector<1x1x64xf32>
    tpu.vector_store %arg4[%c0_10, %c1, %c0_11], %15 {strides = array<i32>} : memref<1x2x64xf32, #tpu.memory_space<vmem>>, vector<1x1x64xf32>,
    return
  }
  func.func @transform_0(%arg0: i32) -> (i32, i32) {
    %c0_i32 = arith.constant 0 : i32
    %c0_i32_0 = arith.constant 0 : i32
    return %arg0, %c0_i32 : i32, i32
  }
  func.func @transform_1(%arg0: i32) -> (i32, i32) {
    %c0_i32 = arith.constant 0 : i32
    %c0_i32_0 = arith.constant 0 : i32
    %c0_i32_1 = arith.constant 0 : i32
    return %c0_i32, %c0_i32_0 : i32, i32
  }
  func.func @transform_2(%arg0: i32) -> (i32, i32) {
    %c0_i32 = arith.constant 0 : i32
    %c0_i32_0 = arith.constant 0 : i32
    return %arg0, %c0_i32 : i32, i32
  }
  func.func @transform_3(%arg0: i32) -> (i32, i32, i32) {
    %c0_i32 = arith.constant 0 : i32
    %c0_i32_0 = arith.constant 0 : i32
    %c0_i32_1 = arith.constant 0 : i32
    return %arg0, %c0_i32, %c0_i32_0 : i32, i32, i32
  }
}

</mosaic_0001>

<llo_original>
// kernel: tpu_custom_call.1
$region0: #{tpu_custom_call.1}
  #allocation0 [shape = 'u32[]', space=smem, size = 0x4, offset = 0x4, fixed_abs, tag = 'smem constant byte address 0x4 - core index']
  #allocation1 [shape = 'u32[72,128]{1,0:T(1,128)}', space=vmem, size = 0x9000, scoped, tag = 'internal scratch']
  %s0 = inlined_call_operand.vmem [shape: bf16[2048,147], index: 0, kind: input, shape index: {}]
  %s1 = inlined_call_operand.vmem [shape: bf16[147,64], index: 1, kind: input, shape index: {}]
  %s2 = inlined_call_operand.vmem [shape: bf16[2048,64], index: 2, kind: output, shape index: {0}]
  %s3 = inlined_call_operand.hbm [shape: f32[8,2,64], index: 3, kind: output, shape index: {1}]
  %4 = xla_tuple %s2, %s3
  %s5 = sld [smem:[#allocation0]]
  $region49: #{tpu_custom_call.1} parent=0
    _
  %s7 = ssub.s32 1, %s5
  %s8 = scalar_select 0, %s7, %s5
  $region1: #{tpu_custom_call.1} parent=0
    #allocation2 [shape = 'u8[2048]{0}', space=vmem, size = 0x800, scoped, tag = 'output window, operand 1']
    #allocation3 [shape = 's32[2]{0}', space=sflag, size = 0x8, scoped, tag = 'scoped memory for tpu_custom_call.1']
    %9 = vsyncpa [#allocation3], 0
    %s10 = scalar_lea.sflag [#allocation3], 1
    %11 = vsyncpa %s10, 0
    loop: start=0, step=1, limit=10
    $region2: #{tpu_custom_call.1} parent=1 // loop_pre_header
      _
    $region3: #{tpu_custom_call.1} parent=1 // loop_header
      %s13 = sphi 0, %s17
      %p14 = scmp.ge.s32.totalorder %s13, 10
      %s23 = sphi 0, %s25
      %s26 = sphi 0, %s23
      %s27 = sphi 0, %s26
      %s43 = sphi 0, %s27
      %s47 = sphi 0, %s47
      %s49 = sphi 0, %s47
      %s50 = sphi 0, %s49
      %s64 = sphi 0, %s50
      %s70 = sphi 0, %s72
      %s73 = sphi 0, %s70
      %s74 = sphi 0, %s73
      %s90 = sphi 0, %s74
      %s96 = sphi 0, %s98
      %s99 = sphi 0, %s96
      %s100 = sphi 0, %s99
      %s116 = sphi 0, %s100
    $region4: #{tpu_custom_call.1} parent=1 // loop_header_branch
      %16 = sbr.rel (%p14) target = $region8
    $region5: #{tpu_custom_call.1} parent=1 // loop_body
      %s18 = ssub.s32 %s13, 1
      %s19 = ssub.s32 %s13, 2
      %s20 = sadd.s32 %s13, 1
      %s21 = ssub.s32 %s13, %s20
      %p22 = scmp.eq.s32.totalorder %s21, 0
      %s24 = sadd.s32 %s23, 1
      %s25 = scalar_select %p22, %s23, %s24
      %p28 = pneg %p22
      %p29 = scmp.eq.s32.totalorder %s13, 7
      %p30 = por %p28, %p29
      %p31 = scmp.ne.s32.totalorder %s23, %s26
      %p32 = scmp.eq.s32.totalorder %s13, 0
      %p33 = por %p31, %p32
      %p34 = scmp.ne.s32.totalorder %s23, %s26
      %p35 = scmp.eq.s32.totalorder %s18, 7
      %p36 = por %p34, %p35
      %p37 = scmp.ne.s32.totalorder %s26, %s27
      %p38 = scmp.eq.s32.totalorder %s18, 0
      %p39 = por %p37, %p38
      %p40 = scmp.ne.s32.totalorder %s26, %s27
      %p41 = scmp.eq.s32.totalorder %s19, 7
      %p42 = por %p40, %p41
      %p44 = scmp.ne.s32.totalorder %s27, %s43
      %p45 = scmp.eq.s32.totalorder %s19, 0
      %p46 = por %p44, %p45
      %s48 = sadd.s32 %s47, 1
      %p51 = scmp.eq.s32.totalorder %s13, 7
      %p52 = scmp.ne.s32.totalorder %s47, %s49
      %p53 = scmp.eq.s32.totalorder %s13, 0
      %p54 = por %p52, %p53
      %p55 = scmp.ne.s32.totalorder %s47, %s49
      %p56 = scmp.eq.s32.totalorder %s18, 7
      %p57 = por %p55, %p56
      %p58 = scmp.ne.s32.totalorder %s49, %s50
      %p59 = scmp.eq.s32.totalorder %s18, 0
      %p60 = por %p58, %p59
      %p61 = scmp.ne.s32.totalorder %s49, %s50
      %p62 = scmp.eq.s32.totalorder %s19, 7
      %p63 = por %p61, %p62
      %p65 = scmp.ne.s32.totalorder %s50, %s64
      %p66 = scmp.eq.s32.totalorder %s19, 0
      %p67 = por %p65, %p66
      %s68 = ssub.s32 %s13, %s20
      %p69 = scmp.eq.s32.totalorder %s68, 0
      %s71 = sadd.s32 %s70, 1
      %s72 = scalar_select %p69, %s70, %s71
      %p75 = pneg %p69
      %p76 = scmp.eq.s32.totalorder %s13, 7
      %p77 = por %p75, %p76
      %p78 = scmp.ne.s32.totalorder %s70, %s73
      %p79 = scmp.eq.s32.totalorder %s13, 0
      %p80 = por %p78, %p79
      %p81 = scmp.ne.s32.totalorder %s70, %s73
      %p82 = scmp.eq.s32.totalorder %s18, 7
      %p83 = por %p81, %p82
      %p84 = scmp.ne.s32.totalorder %s73, %s74
      %p85 = scmp.eq.s32.totalorder %s18, 0
      %p86 = por %p84, %p85
      %p87 = scmp.ne.s32.totalorder %s73, %s74
      %p88 = scmp.eq.s32.totalorder %s19, 7
      %p89 = por %p87, %p88
      %p91 = scmp.ne.s32.totalorder %s74, %s90
      %p92 = scmp.eq.s32.totalorder %s19, 0
      %p93 = por %p91, %p92
      %s94 = ssub.s32 %s13, %s20
      %p95 = scmp.eq.s32.totalorder %s94, 0
      %s97 = sadd.s32 %s96, 1
      %s98 = scalar_select %p95, %s96, %s97
      %p101 = pneg %p95
      %p102 = scmp.eq.s32.totalorder %s13, 7
      %p103 = por %p101, %p102
      %p104 = scmp.ne.s32.totalorder %s96, %s99
      %p105 = scmp.eq.s32.totalorder %s13, 0
      %p106 = por %p104, %p105
      %p107 = scmp.ne.s32.totalorder %s96, %s99
      %p108 = scmp.eq.s32.totalorder %s18, 7
      %p109 = por %p107, %p108
      %p110 = scmp.ne.s32.totalorder %s99, %s100
      %p111 = scmp.eq.s32.totalorder %s18, 0
      %p112 = por %p110, %p111
      %p113 = scmp.ne.s32.totalorder %s99, %s100
      %p114 = scmp.eq.s32.totalorder %s19, 7
      %p115 = por %p113, %p114
      %p117 = scmp.ne.s32.totalorder %s100, %s116
      %p118 = scmp.eq.s32.totalorder %s19, 0
      %p119 = por %p117, %p118
      %p120 = scmp.le.s32.totalorder 1, %s13
      %p121 = scmp.lt.s32.totalorder %s13, 9
      %p122 = pnand %p120, %p121
      %p123 = pneg %p122
      // Predicated region
      $region9: #{tpu_custom_call.1} parent=5 // pred_check
        _
      $region10: #{tpu_custom_call.1} parent=5 // pred_check_branch
        %125 = sbr.rel (%p122) target = $region12
      $region11: #{tpu_custom_call.1} parent=5 // pred_region
        %s126 = ssub.s32 %s13, 1
        // Predicated region
        $region13: #{tpu_custom_call.1} parent=11 // pred_check
          %p127 = pneg %p60
        $region14: #{tpu_custom_call.1} parent=11 // pred_check_branch
          %129 = sbr.rel (%p127) target = $region16
        $region15: #{tpu_custom_call.1} parent=11 // pred_region
          _
        $region16: #{tpu_custom_call.1} parent=11 // pred_fallthru
          _
      $region12: #{tpu_custom_call.1} parent=5 // pred_fallthru
        _
      %p130 = scmp.lt.s32.totalorder %s13, 8
      // Predicated region
      $region17: #{tpu_custom_call.1} parent=5 // pred_check
        %p131 = pneg %p130
      $region18: #{tpu_custom_call.1} parent=5 // pred_check_branch
        %133 = sbr.rel (%p131) target = $region20
      $region19: #{tpu_custom_call.1} parent=5 // pred_region
        // Predicated region
        $region21: #{tpu_custom_call.1} parent=19 // pred_check
          %p134 = pneg %p33
        $region22: #{tpu_custom_call.1} parent=19 // pred_check_branch
          %136 = sbr.rel (%p134) target = $region24
        $region23: #{tpu_custom_call.1} parent=19 // pred_region
          %s137 = smul.u32 32, %s13
          %p138 = scmp.lt.s32.totalorder %s137, 255
          %s139 = scalar_select %p138, %s137, 255
          %s140 = smul.addr %s139, 2
          %s141 = smul.addr %s140, 4
          %s142 = scalar_lea.vmem %s0, %s141
          %s143 = smul.u32 32, %s13
        $region24: #{tpu_custom_call.1} parent=19 // pred_fallthru
          _
      $region20: #{tpu_custom_call.1} parent=5 // pred_fallthru
        _
      %p144 = scmp.le.s32.totalorder 1, %s13
      %p145 = scmp.lt.s32.totalorder %s13, 9
      %p146 = pnand %p144, %p145
      %p147 = pneg %p146
      // Predicated region
      $region25: #{tpu_custom_call.1} parent=5 // pred_check
        _
      $region26: #{tpu_custom_call.1} parent=5 // pred_check_branch
        %149 = sbr.rel (%p146) target = $region28
      $region27: #{tpu_custom_call.1} parent=5 // pred_region
        %s150 = ssub.s32 %s13, 1
        %s151 = smul.u32 32, %s18
        %p152 = scmp.lt.s32.totalorder %s151, 255
        %s153 = scalar_select %p152, %s151, 255
        %s154 = smul.addr %s153, 2
        %s155 = smul.addr %s154, 4
        %s156 = scalar_lea.vmem %s0, %s155
        %p157 = pneg %p39
        %p158 = pneg %p36
        %p159 = pneg %p60
        %p160 = pneg %p57
        %p161 = pneg %p86
        %p162 = pneg %p83
        %s163 = smul.u32 32, %s18
        %p164 = scmp.lt.s32.totalorder %s163, 255
        %s165 = scalar_select %p164, %s163, 255
        %s166 = smul.addr %s165, 4
        %s167 = scalar_lea.vmem %s2, %s166
        %p168 = pneg %p112
        %p169 = pneg %p109
        %s170 = sand.u32 %s99, 1
        %s171 = scalar_lea.sflag [#allocation3], %s170
        %s172 = sand.u32 %s99, 1
        %s173 = smul.addr %s172, 2
        %s174 = scalar_lea.vmem [#allocation2], %s173
        %s175 = smul.u32 32, %s18
        %p176 = scmp.lt.s32.totalorder %s175, 255
        %s177 = scalar_select %p176, %s175, 255
        %s178 = smul.addr %s177, 2
        %s179 = smul.addr %s178, 4
        %s180 = scalar_lea.vmem %s0, %s179
        %s181 = smul.u32 32, %s18
        %s182 = smul.u32 32, %s18
        %p183 = scmp.lt.s32.totalorder %s182, 255
        %s184 = scalar_select %p183, %s182, 255
        %s185 = smul.addr %s184, 4
        %s186 = scalar_lea.vmem %s2, %s185
        %s187 = smul.u32 32, %s18
        %v189 = vld [vmem:[%s180] sm:$0xff]
        %v190 = vld [vmem:[%s180 + $0x8] sm:$0xff]
        %v191 = vld [vmem:[%s180 + $0x10] sm:$0xff]
        %v192 = vld [vmem:[%s180 + $0x18] sm:$0xff]
        %v193 = vld [vmem:[%s180 + $0x20] sm:$0xff]
        %v194 = vld [vmem:[%s180 + $0x28] sm:$0xff]
        %v195 = vld [vmem:[%s180 + $0x30] sm:$0xff]
        %v196 = vld [vmem:[%s180 + $0x38] sm:$0xff]
        %v197 = vld [vmem:[%s180 + $0x40] sm:$0xff]
        %v198 = vld [vmem:[%s180 + $0x48] sm:$0xff]
        %v199 = vld [vmem:[%s180 + $0x50] sm:$0xff]
        %v200 = vld [vmem:[%s180 + $0x58] sm:$0xff]
        %v201 = vld [vmem:[%s180 + $0x60] sm:$0xff]
        %v202 = vld [vmem:[%s180 + $0x68] sm:$0xff]
        %v203 = vld [vmem:[%s180 + $0x70] sm:$0xff]
        %v204 = vld [vmem:[%s180 + $0x78] sm:$0xff]
        %v205 = vld [vmem:[%s180 + $0x80] sm:$0xff]
        %v206 = vld [vmem:[%s180 + $0x88] sm:$0xff]
        %v207 = vld [vmem:[%s180 + $0x90] sm:$0xff]
        %v208 = vld [vmem:[%s180 + $0x98] sm:$0xff]
        %v209 = vld [vmem:[%s180 + $0xa0] sm:$0xff]
        %v210 = vld [vmem:[%s180 + $0xa8] sm:$0xff]
        %v211 = vld [vmem:[%s180 + $0xb0] sm:$0xff]
        %v212 = vld [vmem:[%s180 + $0xb8] sm:$0xff]
        %v213 = vld [vmem:[%s180 + $0xc0] sm:$0xff]
        %v214 = vld [vmem:[%s180 + $0xc8] sm:$0xff]
        %v215 = vld [vmem:[%s180 + $0xd0] sm:$0xff]
        %v216 = vld [vmem:[%s180 + $0xd8] sm:$0xff]
        %v217 = vld [vmem:[%s180 + $0xe0] sm:$0xff]
        %v218 = vld [vmem:[%s180 + $0xe8] sm:$0xff]
        %v219 = vld [vmem:[%s180 + $0xf0] sm:$0xff]
        %v220 = vld [vmem:[%s180 + $0xf8] sm:$0xff]
        %v221 = vld [vmem:[%s1] sm:$0xf]
        %v222 = vld [vmem:[%s1 + $0x4] sm:$0xf]
        %v223 = vld [vmem:[%s1 + $0x8] sm:$0xf]
        %v224 = vld [vmem:[%s1 + $0xc] sm:$0xf]
        %v225 = vld [vmem:[%s1 + $0x10] sm:$0xf]
        %v226 = vld [vmem:[%s1 + $0x14] sm:$0xf]
        %v227 = vld [vmem:[%s1 + $0x18] sm:$0xf]
        %v228 = vld [vmem:[%s1 + $0x1c] sm:$0xf]
        %v229 = vld [vmem:[%s1 + $0x20] sm:$0xf]
        %v230 = vld [vmem:[%s1 + $0x24] sm:$0xf]
        %v231 = vld [vmem:[%s1 + $0x28] sm:$0xf]
        %v232 = vld [vmem:[%s1 + $0x2c] sm:$0xf]
        %v233 = vld [vmem:[%s1 + $0x30] sm:$0xf]
        %v234 = vld [vmem:[%s1 + $0x34] sm:$0xf]
        %v235 = vld [vmem:[%s1 + $0x38] sm:$0xf]
        %v236 = vld [vmem:[%s1 + $0x3c] sm:$0xf]
        %v237 = vld [vmem:[%s1 + $0x40] sm:$0xf]
        %v238 = vld [vmem:[%s1 + $0x44] sm:$0xf]
        %v239 = vld [vmem:[%s1 + $0x48] sm:$0x3]
        %v272 = vunpack.c.l.b16 %v189
        %v273 = vunpack.c.h.b16 %v189
        %v274 = vunpack.c.l.b16 %v190
        %v275 = vunpack.c.h.b16 %v190
        %v276 = vunpack.c.l.b16 %v191
        %v277 = vunpack.c.h.b16 %v191
        %v278 = vunpack.c.l.b16 %v192
        %v279 = vunpack.c.h.b16 %v192
        %v280 = vunpack.c.l.b16 %v193
        %v281 = vunpack.c.h.b16 %v193
        %v282 = vunpack.c.l.b16 %v194
        %v283 = vunpack.c.h.b16 %v194
        %v284 = vunpack.c.l.b16 %v195
        %v285 = vunpack.c.h.b16 %v195
        %v286 = vunpack.c.l.b16 %v196
        %v287 = vunpack.c.h.b16 %v196
        %v288 = vunpack.c.l.b16 %v197
        %v289 = vunpack.c.h.b16 %v197
        %v290 = vunpack.c.l.b16 %v198
        %v291 = vunpack.c.h.b16 %v198
        %v292 = vunpack.c.l.b16 %v199
        %v293 = vunpack.c.h.b16 %v199
        %v294 = vunpack.c.l.b16 %v200
        %v295 = vunpack.c.h.b16 %v200
        %v296 = vunpack.c.l.b16 %v201
        %v297 = vunpack.c.h.b16 %v201
        %v298 = vunpack.c.l.b16 %v202
        %v299 = vunpack.c.h.b16 %v202
        %v300 = vunpack.c.l.b16 %v203
        %v301 = vunpack.c.h.b16 %v203
        %v302 = vunpack.c.l.b16 %v204
        %v303 = vunpack.c.h.b16 %v204
        %v304 = vunpack.c.l.b16 %v205
        %v305 = vunpack.c.h.b16 %v205
        %v306 = vunpack.c.l.b16 %v206
        %v307 = vunpack.c.h.b16 %v206
        %v308 = vunpack.c.l.b16 %v207
        %v309 = vunpack.c.h.b16 %v207
        %v310 = vunpack.c.l.b16 %v208
        %v311 = vunpack.c.h.b16 %v208
        %v312 = vunpack.c.l.b16 %v209
        %v313 = vunpack.c.h.b16 %v209
        %v314 = vunpack.c.l.b16 %v210
        %v315 = vunpack.c.h.b16 %v210
        %v316 = vunpack.c.l.b16 %v211
        %v317 = vunpack.c.h.b16 %v211
        %v318 = vunpack.c.l.b16 %v212
        %v319 = vunpack.c.h.b16 %v212
        %v320 = vunpack.c.l.b16 %v213
        %v321 = vunpack.c.h.b16 %v213
        %v322 = vunpack.c.l.b16 %v214
        %v323 = vunpack.c.h.b16 %v214
        %v324 = vunpack.c.l.b16 %v215
        %v325 = vunpack.c.h.b16 %v215
        %v326 = vunpack.c.l.b16 %v216
        %v327 = vunpack.c.h.b16 %v216
        %v328 = vunpack.c.l.b16 %v217
        %v329 = vunpack.c.h.b16 %v217
        %v330 = vunpack.c.l.b16 %v218
        %v331 = vunpack.c.h.b16 %v218
        %v332 = vunpack.c.l.b16 %v219
        %v333 = vunpack.c.h.b16 %v219
        %v334 = vunpack.c.l.b16 %v220
        %v335 = vunpack.c.h.b16 %v220
        %v336 = vpack.c.b16 %v274, %v272
        %v337 = vpack.c.b16 %v275, %v273
        %v338 = vpack.c.b16 %v278, %v276
        %v339 = vpack.c.b16 %v279, %v277
        %v340 = vpack.c.b16 %v282, %v280
        %v341 = vpack.c.b16 %v283, %v281
        %v342 = vpack.c.b16 %v286, %v284
        %v343 = vpack.c.b16 %v287, %v285
        %v344 = vpack.c.b16 %v290, %v288
        %v345 = vpack.c.b16 %v291, %v289
        %v346 = vpack.c.b16 %v294, %v292
        %v347 = vpack.c.b16 %v295, %v293
        %v348 = vpack.c.b16 %v298, %v296
        %v349 = vpack.c.b16 %v299, %v297
        %v350 = vpack.c.b16 %v302, %v300
        %v351 = vpack.c.b16 %v303, %v301
        %v352 = vpack.c.b16 %v306, %v304
        %v353 = vpack.c.b16 %v307, %v305
        %v354 = vpack.c.b16 %v310, %v308
        %v355 = vpack.c.b16 %v311, %v309
        %v356 = vpack.c.b16 %v314, %v312
        %v357 = vpack.c.b16 %v315, %v313
        %v358 = vpack.c.b16 %v318, %v316
        %v359 = vpack.c.b16 %v319, %v317
        %v360 = vpack.c.b16 %v322, %v320
        %v361 = vpack.c.b16 %v323, %v321
        %v362 = vpack.c.b16 %v326, %v324
        %v363 = vpack.c.b16 %v327, %v325
        %v364 = vpack.c.b16 %v330, %v328
        %v365 = vpack.c.b16 %v331, %v329
        %v366 = vpack.c.b16 %v334, %v332
        %v367 = vpack.c.b16 %v335, %v333
        %v403 = vunpack.c.l.b16 %v221
        %v404 = vunpack.c.l.b16 %v222
        %v405 = vunpack.c.l.b16 %v223
        %v406 = vunpack.c.l.b16 %v224
        %v407 = vunpack.c.l.b16 %v225
        %v408 = vunpack.c.l.b16 %v226
        %v409 = vunpack.c.l.b16 %v227
        %v410 = vunpack.c.l.b16 %v228
        %v411 = vunpack.c.l.b16 %v229
        %v412 = vunpack.c.l.b16 %v230
        %v413 = vunpack.c.l.b16 %v231
        %v414 = vunpack.c.l.b16 %v232
        %v415 = vunpack.c.l.b16 %v233
        %v416 = vunpack.c.l.b16 %v234
        %v417 = vunpack.c.l.b16 %v235
        %v418 = vunpack.c.l.b16 %v236
        %v419 = vunpack.c.l.b16 %v237
        %v420 = vunpack.c.l.b16 %v238
        %v421 = vunpack.c.l.b16 %v239
        %v422 = vpack.c.b16 %v404, %v403
        %v423 = vpack.c.b16 %v406, %v405
        %v424 = vpack.c.b16 %v408, %v407
        %v425 = vpack.c.b16 %v410, %v409
        %v426 = vpack.c.b16 %v412, %v411
        %v427 = vpack.c.b16 %v414, %v413
        %v428 = vpack.c.b16 %v416, %v415
        %v429 = vpack.c.b16 %v418, %v417
        %v430 = vpack.c.b16 %v420, %v419
        %v431 = vpack.c.b16 %v421, %v421
        %vm441 = vcmask 154624
        %v443 = vsel %vm441, %v337, 0
        %v446 = vsel %vm441, %v339, 0
        %v449 = vsel %vm441, %v341, 0
        %v452 = vsel %vm441, %v343, 0
        %v455 = vsel %vm441, %v345, 0
        %v458 = vsel %vm441, %v347, 0
        %v461 = vsel %vm441, %v349, 0
        %v464 = vsel %vm441, %v351, 0
        %v467 = vsel %vm441, %v353, 0
        %v470 = vsel %vm441, %v355, 0
        %v473 = vsel %vm441, %v357, 0
        %v476 = vsel %vm441, %v359, 0
        %v479 = vsel %vm441, %v361, 0
        %v482 = vsel %vm441, %v363, 0
        %v485 = vsel %vm441, %v365, 0
        %v488 = vsel %vm441, %v367, 0
        %vm490 = vcmask 1040384
        %vm491 = vcmask 1041408
        %v492 = vsel %vm490, 4294967295, 65535
        %v493 = vsel %vm491, %v492, 0
        %v495 = vand.u32 %v431, %v493
        %497 = vmatpush.bf16.msra.mxu0 %v429
        %498 = vmatpush.bf16.msra.mxu0 %v428
        %499 = vmatpush.bf16.msra.mxu0 %v427
        %500 = vmatpush.bf16.msra.mxu0 %v426
        %501 = vmatpush.bf16.msra.mxu0 %v425
        %502 = vmatpush.bf16.msra.mxu0 %v424
        %503 = vmatpush.bf16.msra.mxu0 %v423
        %504 = vmatpush.bf16.msra.mxu0 %v422
        %505 = vmatmul.bf16.gmra.mxu0 %v336
        %v506 = vpop.f32.mrf.mxu0
        %v507 = vadd.f32 0.0, %v506
        %v508 = vpop.f32.mrf.mxu0
        %v509 = vadd.f32 0.0, %v508
        %510 = vmatmul.bf16.gmra.mxu0 %v338
        %v511 = vpop.f32.mrf.mxu0
        %v512 = vadd.f32 0.0, %v511
        %v513 = vpop.f32.mrf.mxu0
        %v514 = vadd.f32 0.0, %v513
        %515 = vmatmul.bf16.gmra.mxu0 %v340
        %v516 = vpop.f32.mrf.mxu0
        %v517 = vadd.f32 0.0, %v516
        %v518 = vpop.f32.mrf.mxu0
        %v519 = vadd.f32 0.0, %v518
        %520 = vmatmul.bf16.gmra.mxu0 %v342
        %v521 = vpop.f32.mrf.mxu0
        %v522 = vadd.f32 0.0, %v521
        %v523 = vpop.f32.mrf.mxu0
        %v524 = vadd.f32 0.0, %v523
        %525 = vmatmul.bf16.gmra.mxu0 %v344
        %v526 = vpop.f32.mrf.mxu0
        %v527 = vadd.f32 0.0, %v526
        %v528 = vpop.f32.mrf.mxu0
        %v529 = vadd.f32 0.0, %v528
        %530 = vmatmul.bf16.gmra.mxu0 %v346
        %v531 = vpop.f32.mrf.mxu0
        %v532 = vadd.f32 0.0, %v531
        %v533 = vpop.f32.mrf.mxu0
        %v534 = vadd.f32 0.0, %v533
        %535 = vmatmul.bf16.gmra.mxu0 %v348
        %v536 = vpop.f32.mrf.mxu0
        %v537 = vadd.f32 0.0, %v536
        %v538 = vpop.f32.mrf.mxu0
        %v539 = vadd.f32 0.0, %v538
        %540 = vmatmul.bf16.gmra.mxu0 %v350
        %v541 = vpop.f32.mrf.mxu0
        %v542 = vadd.f32 0.0, %v541
        %v543 = vpop.f32.mrf.mxu0
        %v544 = vadd.f32 0.0, %v543
        %545 = vmatmul.bf16.gmra.mxu0 %v352
        %v546 = vpop.f32.mrf.mxu0
        %v547 = vadd.f32 0.0, %v546
        %v548 = vpop.f32.mrf.mxu0
        %v549 = vadd.f32 0.0, %v548
        %550 = vmatmul.bf16.gmra.mxu0 %v354
        %v551 = vpop.f32.mrf.mxu0
        %v552 = vadd.f32 0.0, %v551
        %v553 = vpop.f32.mrf.mxu0
        %v554 = vadd.f32 0.0, %v553
        %555 = vmatmul.bf16.gmra.mxu0 %v356
        %v556 = vpop.f32.mrf.mxu0
        %v557 = vadd.f32 0.0, %v556
        %v558 = vpop.f32.mrf.mxu0
        %v559 = vadd.f32 0.0, %v558
        %560 = vmatmul.bf16.gmra.mxu0 %v358
        %v561 = vpop.f32.mrf.mxu0
        %v562 = vadd.f32 0.0, %v561
        %v563 = vpop.f32.mrf.mxu0
        %v564 = vadd.f32 0.0, %v563
        %565 = vmatmul.bf16.gmra.mxu0 %v360
        %v566 = vpop.f32.mrf.mxu0
        %v567 = vadd.f32 0.0, %v566
        %v568 = vpop.f32.mrf.mxu0
        %v569 = vadd.f32 0.0, %v568
        %570 = vmatmul.bf16.gmra.mxu0 %v362
        %v571 = vpop.f32.mrf.mxu0
        %v572 = vadd.f32 0.0, %v571
        %v573 = vpop.f32.mrf.mxu0
        %v574 = vadd.f32 0.0, %v573
        %575 = vmatmul.bf16.gmra.mxu0 %v364
        %v576 = vpop.f32.mrf.mxu0
        %v577 = vadd.f32 0.0, %v576
        %v578 = vpop.f32.mrf.mxu0
        %v579 = vadd.f32 0.0, %v578
        %580 = vmatmul.bf16.gmra.mxu0 %v366
        %v581 = vpop.f32.mrf.mxu0
        %v582 = vadd.f32 0.0, %v581
        %v583 = vpop.f32.mrf.mxu0
        %v584 = vadd.f32 0.0, %v583
        %585 = vdwg.mxu0
        %586 = vmatpush.bf16.msra.mxu0 0
        %587 = vmatpush.bf16.msra.mxu0 0
        %588 = vmatpush.bf16.msra.mxu0 0
        %589 = vmatpush.bf16.msra.mxu0 0
        %590 = vmatpush.bf16.msra.mxu0 0
        %591 = vmatpush.bf16.msra.mxu0 0
        %592 = vmatpush.bf16.msra.mxu0 %v495
        %593 = vmatpush.bf16.msra.mxu0 %v430
        %594 = vmatmul.bf16.gmra.mxu0 %v443
        %v595 = vpop.f32.mrf.mxu0
        %v596 = vadd.f32 %v507, %v595
        %v597 = vpop.f32.mrf.mxu0
        %v598 = vadd.f32 %v509, %v597
        %599 = vmatmul.bf16.gmra.mxu0 %v446
        %v600 = vpop.f32.mrf.mxu0
        %v601 = vadd.f32 %v512, %v600
        %v602 = vpop.f32.mrf.mxu0
        %v603 = vadd.f32 %v514, %v602
        %604 = vmatmul.bf16.gmra.mxu0 %v449
        %v605 = vpop.f32.mrf.mxu0
        %v606 = vadd.f32 %v517, %v605
        %v607 = vpop.f32.mrf.mxu0
        %v608 = vadd.f32 %v519, %v607
        %609 = vmatmul.bf16.gmra.mxu0 %v452
        %v610 = vpop.f32.mrf.mxu0
        %v611 = vadd.f32 %v522, %v610
        %v612 = vpop.f32.mrf.mxu0
        %v613 = vadd.f32 %v524, %v612
        %614 = vmatmul.bf16.gmra.mxu0 %v455
        %v615 = vpop.f32.mrf.mxu0
        %v616 = vadd.f32 %v527, %v615
        %v617 = vpop.f32.mrf.mxu0
        %v618 = vadd.f32 %v529, %v617
        %619 = vmatmul.bf16.gmra.mxu0 %v458
        %v620 = vpop.f32.mrf.mxu0
        %v621 = vadd.f32 %v532, %v620
        %v622 = vpop.f32.mrf.mxu0
        %v623 = vadd.f32 %v534, %v622
        %624 = vmatmul.bf16.gmra.mxu0 %v461
        %v625 = vpop.f32.mrf.mxu0
        %v626 = vadd.f32 %v537, %v625
        %v627 = vpop.f32.mrf.mxu0
        %v628 = vadd.f32 %v539, %v627
        %629 = vmatmul.bf16.gmra.mxu0 %v464
        %v630 = vpop.f32.mrf.mxu0
        %v631 = vadd.f32 %v542, %v630
        %v632 = vpop.f32.mrf.mxu0
        %v633 = vadd.f32 %v544, %v632
        %634 = vmatmul.bf16.gmra.mxu0 %v467
        %v635 = vpop.f32.mrf.mxu0
        %v636 = vadd.f32 %v547, %v635
        %v637 = vpop.f32.mrf.mxu0
        %v638 = vadd.f32 %v549, %v637
        %639 = vmatmul.bf16.gmra.mxu0 %v470
        %v640 = vpop.f32.mrf.mxu0
        %v641 = vadd.f32 %v552, %v640
        %v642 = vpop.f32.mrf.mxu0
        %v643 = vadd.f32 %v554, %v642
        %644 = vmatmul.bf16.gmra.mxu0 %v473
        %v645 = vpop.f32.mrf.mxu0
        %v646 = vadd.f32 %v557, %v645
        %v647 = vpop.f32.mrf.mxu0
        %v648 = vadd.f32 %v559, %v647
        %649 = vmatmul.bf16.gmra.mxu0 %v476
        %v650 = vpop.f32.mrf.mxu0
        %v651 = vadd.f32 %v562, %v650
        %v652 = vpop.f32.mrf.mxu0
        %v653 = vadd.f32 %v564, %v652
        %654 = vmatmul.bf16.gmra.mxu0 %v479
        %v655 = vpop.f32.mrf.mxu0
        %v656 = vadd.f32 %v567, %v655
        %v657 = vpop.f32.mrf.mxu0
        %v658 = vadd.f32 %v569, %v657
        %659 = vmatmul.bf16.gmra.mxu0 %v482
        %v660 = vpop.f32.mrf.mxu0
        %v661 = vadd.f32 %v572, %v660
        %v662 = vpop.f32.mrf.mxu0
        %v663 = vadd.f32 %v574, %v662
        %664 = vmatmul.bf16.gmra.mxu0 %v485
        %v665 = vpop.f32.mrf.mxu0
        %v666 = vadd.f32 %v577, %v665
        %v667 = vpop.f32.mrf.mxu0
        %v668 = vadd.f32 %v579, %v667
        %669 = vmatmul.bf16.gmra.mxu0 %v488
        %v670 = vpop.f32.mrf.mxu0
        %v671 = vadd.f32 %v582, %v670
        %v672 = vpop.f32.mrf.mxu0
        %v673 = vadd.f32 %v584, %v672
        %674 = vdwg.mxu0
        %v675 = vpack.c.bf16 %v596, %v596
        %v676 = vpack.c.bf16 %v598, %v598
        %v677 = vpack.c.bf16 %v601, %v601
        %v678 = vpack.c.bf16 %v603, %v603
        %v679 = vpack.c.bf16 %v606, %v606
        %v680 = vpack.c.bf16 %v608, %v608
        %v681 = vpack.c.bf16 %v611, %v611
        %v682 = vpack.c.bf16 %v613, %v613
        %v683 = vpack.c.bf16 %v616, %v616
        %v684 = vpack.c.bf16 %v618, %v618
        %v685 = vpack.c.bf16 %v621, %v621
        %v686 = vpack.c.bf16 %v623, %v623
        %v687 = vpack.c.bf16 %v626, %v626
        %v688 = vpack.c.bf16 %v628, %v628
        %v689 = vpack.c.bf16 %v631, %v631
        %v690 = vpack.c.bf16 %v633, %v633
        %v691 = vpack.c.bf16 %v636, %v636
        %v692 = vpack.c.bf16 %v638, %v638
        %v693 = vpack.c.bf16 %v641, %v641
        %v694 = vpack.c.bf16 %v643, %v643
        %v695 = vpack.c.bf16 %v646, %v646
        %v696 = vpack.c.bf16 %v648, %v648
        %v697 = vpack.c.bf16 %v651, %v651
        %v698 = vpack.c.bf16 %v653, %v653
        %v699 = vpack.c.bf16 %v656, %v656
        %v700 = vpack.c.bf16 %v658, %v658
        %v701 = vpack.c.bf16 %v661, %v661
        %v702 = vpack.c.bf16 %v663, %v663
        %v703 = vpack.c.bf16 %v666, %v666
        %v704 = vpack.c.bf16 %v668, %v668
        %v705 = vpack.c.bf16 %v671, %v671
        %v706 = vpack.c.bf16 %v673, %v673
        %vm707 = vcmask 519168
        %708 = vst.msk [vmem:[%s186] sm:$0xf] %vm707, %v675
        %709 = vst.msk [vmem:[%s186 + $0x4] sm:$0xf] %vm707, %v676
        %710 = vst.msk [vmem:[%s186 + $0x8] sm:$0xf] %vm707, %v677
        %711 = vst.msk [vmem:[%s186 + $0xc] sm:$0xf] %vm707, %v678
        %712 = vst.msk [vmem:[%s186 + $0x10] sm:$0xf] %vm707, %v679
        %713 = vst.msk [vmem:[%s186 + $0x14] sm:$0xf] %vm707, %v680
        %714 = vst.msk [vmem:[%s186 + $0x18] sm:$0xf] %vm707, %v681
        %715 = vst.msk [vmem:[%s186 + $0x1c] sm:$0xf] %vm707, %v682
        %716 = vst.msk [vmem:[%s186 + $0x20] sm:$0xf] %vm707, %v683
        %717 = vst.msk [vmem:[%s186 + $0x24] sm:$0xf] %vm707, %v684
        %718 = vst.msk [vmem:[%s186 + $0x28] sm:$0xf] %vm707, %v685
        %719 = vst.msk [vmem:[%s186 + $0x2c] sm:$0xf] %vm707, %v686
        %720 = vst.msk [vmem:[%s186 + $0x30] sm:$0xf] %vm707, %v687
        %721 = vst.msk [vmem:[%s186 + $0x34] sm:$0xf] %vm707, %v688
        %722 = vst.msk [vmem:[%s186 + $0x38] sm:$0xf] %vm707, %v689
        %723 = vst.msk [vmem:[%s186 + $0x3c] sm:$0xf] %vm707, %v690
        %724 = vst.msk [vmem:[%s186 + $0x40] sm:$0xf] %vm707, %v691
        %725 = vst.msk [vmem:[%s186 + $0x44] sm:$0xf] %vm707, %v692
        %726 = vst.msk [vmem:[%s186 + $0x48] sm:$0xf] %vm707, %v693
        %727 = vst.msk [vmem:[%s186 + $0x4c] sm:$0xf] %vm707, %v694
        %728 = vst.msk [vmem:[%s186 + $0x50] sm:$0xf] %vm707, %v695
        %729 = vst.msk [vmem:[%s186 + $0x54] sm:$0xf] %vm707, %v696
        %730 = vst.msk [vmem:[%s186 + $0x58] sm:$0xf] %vm707, %v697
        %731 = vst.msk [vmem:[%s186 + $0x5c] sm:$0xf] %vm707, %v698
        %732 = vst.msk [vmem:[%s186 + $0x60] sm:$0xf] %vm707, %v699
        %733 = vst.msk [vmem:[%s186 + $0x64] sm:$0xf] %vm707, %v700
        %734 = vst.msk [vmem:[%s186 + $0x68] sm:$0xf] %vm707, %v701
        %735 = vst.msk [vmem:[%s186 + $0x6c] sm:$0xf] %vm707, %v702
        %736 = vst.msk [vmem:[%s186 + $0x70] sm:$0xf] %vm707, %v703
        %737 = vst.msk [vmem:[%s186 + $0x74] sm:$0xf] %vm707, %v704
        %738 = vst.msk [vmem:[%s186 + $0x78] sm:$0xf] %vm707, %v705
        %739 = vst.msk [vmem:[%s186 + $0x7c] sm:$0xf] %vm707, %v706
        %vm740 = vcmask 523264
        %v741 = vsel %vm740, %v596, 0.0
        %v742 = vsel %vm740, %v598, 0.0
        %v743 = vadd.f32 %v741, %v742
        %v744 = vsel %vm740, %v601, 0.0
        %v745 = vadd.f32 %v743, %v744
        %v746 = vsel %vm740, %v603, 0.0
        %v747 = vadd.f32 %v745, %v746
        %v748 = vsel %vm740, %v606, 0.0
        %v749 = vadd.f32 %v747, %v748
        %v750 = vsel %vm740, %v608, 0.0
        %v751 = vadd.f32 %v749, %v750
        %v752 = vsel %vm740, %v611, 0.0
        %v753 = vadd.f32 %v751, %v752
        %v754 = vsel %vm740, %v613, 0.0
        %v755 = vadd.f32 %v753, %v754
        %v756 = vsel %vm740, %v616, 0.0
        %v757 = vadd.f32 %v755, %v756
        %v758 = vsel %vm740, %v618, 0.0
        %v759 = vadd.f32 %v757, %v758
        %v760 = vsel %vm740, %v621, 0.0
        %v761 = vadd.f32 %v759, %v760
        %v762 = vsel %vm740, %v623, 0.0
        %v763 = vadd.f32 %v761, %v762
        %v764 = vsel %vm740, %v626, 0.0
        %v765 = vadd.f32 %v763, %v764
        %v766 = vsel %vm740, %v628, 0.0
        %v767 = vadd.f32 %v765, %v766
        %v768 = vsel %vm740, %v631, 0.0
        %v769 = vadd.f32 %v767, %v768
        %v770 = vsel %vm740, %v633, 0.0
        %v771 = vadd.f32 %v769, %v770
        %v772 = vsel %vm740, %v636, 0.0
        %v773 = vadd.f32 %v771, %v772
        %v774 = vsel %vm740, %v638, 0.0
        %v775 = vadd.f32 %v773, %v774
        %v776 = vsel %vm740, %v641, 0.0
        %v777 = vadd.f32 %v775, %v776
        %v778 = vsel %vm740, %v643, 0.0
        %v779 = vadd.f32 %v777, %v778
        %v780 = vsel %vm740, %v646, 0.0
        %v781 = vadd.f32 %v779, %v780
        %v782 = vsel %vm740, %v648, 0.0
        %v783 = vadd.f32 %v781, %v782
        %v784 = vsel %vm740, %v651, 0.0
        %v785 = vadd.f32 %v783, %v784
        %v786 = vsel %vm740, %v653, 0.0
        %v787 = vadd.f32 %v785, %v786
        %v788 = vsel %vm740, %v656, 0.0
        %v789 = vadd.f32 %v787, %v788
        %v790 = vsel %vm740, %v658, 0.0
        %v791 = vadd.f32 %v789, %v790
        %v792 = vsel %vm740, %v661, 0.0
        %v793 = vadd.f32 %v791, %v792
        %v794 = vsel %vm740, %v663, 0.0
        %v795 = vadd.f32 %v793, %v794
        %v796 = vsel %vm740, %v666, 0.0
        %v797 = vadd.f32 %v795, %v796
        %v798 = vsel %vm740, %v668, 0.0
        %v799 = vadd.f32 %v797, %v798
        %v800 = vsel %vm740, %v671, 0.0
        %v801 = vadd.f32 %v799, %v800
        %v802 = vsel %vm740, %v673, 0.0
        %v803 = vadd.f32 %v801, %v802
        %v804 = vrot.slane %v803, 4
        %v805 = vadd.f32 %v803, %v804
        %v806 = vrot.slane %v805, 2
        %v807 = vadd.f32 %v805, %v806
        %v808 = vrot.slane %v807, 1
        %v809 = vadd.f32 %v807, %v808
        %vm810 = vcmask 516096
        %811 = vst.msk [vmem:[%s174] sm:$0x1] %vm810, %v809
        %v812 = vmul.f32 %v596, %v596
        %v813 = vmul.f32 %v598, %v598
        %v814 = vmul.f32 %v601, %v601
        %v815 = vmul.f32 %v603, %v603
        %v816 = vmul.f32 %v606, %v606
        %v817 = vmul.f32 %v608, %v608
        %v818 = vmul.f32 %v611, %v611
        %v819 = vmul.f32 %v613, %v613
        %v820 = vmul.f32 %v616, %v616
        %v821 = vmul.f32 %v618, %v618
        %v822 = vmul.f32 %v621, %v621
        %v823 = vmul.f32 %v623, %v623
        %v824 = vmul.f32 %v626, %v626
        %v825 = vmul.f32 %v628, %v628
        %v826 = vmul.f32 %v631, %v631
        %v827 = vmul.f32 %v633, %v633
        %v828 = vmul.f32 %v636, %v636
        %v829 = vmul.f32 %v638, %v638
        %v830 = vmul.f32 %v641, %v641
        %v831 = vmul.f32 %v643, %v643
        %v832 = vmul.f32 %v646, %v646
        %v833 = vmul.f32 %v648, %v648
        %v834 = vmul.f32 %v651, %v651
        %v835 = vmul.f32 %v653, %v653
        %v836 = vmul.f32 %v656, %v656
        %v837 = vmul.f32 %v658, %v658
        %v838 = vmul.f32 %v661, %v661
        %v839 = vmul.f32 %v663, %v663
        %v840 = vmul.f32 %v666, %v666
        %v841 = vmul.f32 %v668, %v668
        %v842 = vmul.f32 %v671, %v671
        %v843 = vmul.f32 %v673, %v673
        %v844 = vsel %vm740, %v812, 0.0
        %v845 = vsel %vm740, %v813, 0.0
        %v846 = vadd.f32 %v844, %v845
        %v847 = vsel %vm740, %v814, 0.0
        %v848 = vadd.f32 %v846, %v847
        %v849 = vsel %vm740, %v815, 0.0
        %v850 = vadd.f32 %v848, %v849
        %v851 = vsel %vm740, %v816, 0.0
        %v852 = vadd.f32 %v850, %v851
        %v853 = vsel %vm740, %v817, 0.0
        %v854 = vadd.f32 %v852, %v853
        %v855 = vsel %vm740, %v818, 0.0
        %v856 = vadd.f32 %v854, %v855
        %v857 = vsel %vm740, %v819, 0.0
        %v858 = vadd.f32 %v856, %v857
        %v859 = vsel %vm740, %v820, 0.0
        %v860 = vadd.f32 %v858, %v859
        %v861 = vsel %vm740, %v821, 0.0
        %v862 = vadd.f32 %v860, %v861
        %v863 = vsel %vm740, %v822, 0.0
        %v864 = vadd.f32 %v862, %v863
        %v865 = vsel %vm740, %v823, 0.0
        %v866 = vadd.f32 %v864, %v865
        %v867 = vsel %vm740, %v824, 0.0
        %v868 = vadd.f32 %v866, %v867
        %v869 = vsel %vm740, %v825, 0.0
        %v870 = vadd.f32 %v868, %v869
        %v871 = vsel %vm740, %v826, 0.0
        %v872 = vadd.f32 %v870, %v871
        %v873 = vsel %vm740, %v827, 0.0
        %v874 = vadd.f32 %v872, %v873
        %v875 = vsel %vm740, %v828, 0.0
        %v876 = vadd.f32 %v874, %v875
        %v877 = vsel %vm740, %v829, 0.0
        %v878 = vadd.f32 %v876, %v877
        %v879 = vsel %vm740, %v830, 0.0
        %v880 = vadd.f32 %v878, %v879
        %v881 = vsel %vm740, %v831, 0.0
        %v882 = vadd.f32 %v880, %v881
        %v883 = vsel %vm740, %v832, 0.0
        %v884 = vadd.f32 %v882, %v883
        %v885 = vsel %vm740, %v833, 0.0
        %v886 = vadd.f32 %v884, %v885
        %v887 = vsel %vm740, %v834, 0.0
        %v888 = vadd.f32 %v886, %v887
        %v889 = vsel %vm740, %v835, 0.0
        %v890 = vadd.f32 %v888, %v889
        %v891 = vsel %vm740, %v836, 0.0
        %v892 = vadd.f32 %v890, %v891
        %v893 = vsel %vm740, %v837, 0.0
        %v894 = vadd.f32 %v892, %v893
        %v895 = vsel %vm740, %v838, 0.0
        %v896 = vadd.f32 %v894, %v895
        %v897 = vsel %vm740, %v839, 0.0
        %v898 = vadd.f32 %v896, %v897
        %v899 = vsel %vm740, %v840, 0.0
        %v900 = vadd.f32 %v898, %v899
        %v901 = vsel %vm740, %v841, 0.0
        %v902 = vadd.f32 %v900, %v901
        %v903 = vsel %vm740, %v842, 0.0
        %v904 = vadd.f32 %v902, %v903
        %v905 = vsel %vm740, %v843, 0.0
        %v906 = vadd.f32 %v904, %v905
        %v907 = vrot.slane %v906, 4
        %v908 = vadd.f32 %v906, %v907
        %v909 = vrot.slane %v908, 2
        %v910 = vadd.f32 %v908, %v909
        %v911 = vrot.slane %v910, 1
        %v912 = vadd.f32 %v910, %v911
        %913 = vst.msk [vmem:[%s174 + $0x1] sm:$0x1] %vm810, %v912
        %s914 = smul.u32 32, %s18
        %p915 = scmp.lt.s32.totalorder %s914, 255
        %s916 = scalar_select %p915, %s914, 255
        %s917 = smul.addr %s916, 4
        %s918 = scalar_lea.vmem %s2, %s917
        %s919 = sand.u32 %s99, 1
        %s920 = scalar_lea.sflag [#allocation3], %s919
        %s921 = sand.u32 %s99, 1
        %s922 = smul.addr %s921, 2
        %s923 = scalar_lea.vmem [#allocation2], %s922
        // Predicated region
        $region29: #{tpu_custom_call.1} parent=27 // pred_check
          %p924 = pneg %p83
        $region30: #{tpu_custom_call.1} parent=27 // pred_check_branch
          %926 = sbr.rel (%p924) target = $region32
        $region31: #{tpu_custom_call.1} parent=27 // pred_region
          %s927 = smul.u32 32, %s18
        $region32: #{tpu_custom_call.1} parent=27 // pred_fallthru
          _
        // Predicated region
        $region33: #{tpu_custom_call.1} parent=27 // pred_check
          %p928 = pneg %p109
        $region34: #{tpu_custom_call.1} parent=27 // pred_check_branch
          %930 = sbr.rel (%p928) target = $region36
        $region35: #{tpu_custom_call.1} parent=27 // pred_region
          %932 = vsyncadd %s920, 0
          %s933 = smul.addr %s18, 2
          %s934 = scalar_lea.hbm %s3, %s933
          %s936 = sshll.u32 %s923, 4
          %s937 = int_to_ptr.vmem [resolvable:$true] %s936
          %s938 = sshll.u32 %s934, 4
          %s939 = int_to_ptr.hbm [resolvable:$true] %s938
          %941 = dma.vmem_to_hbm [thread:$0]  %s937, 32, %s939, %s920
        $region36: #{tpu_custom_call.1} parent=27 // pred_fallthru
          _
      $region28: #{tpu_custom_call.1} parent=5 // pred_fallthru
        _
      %p942 = scmp.le.s32.totalorder 2, %s13
      // Predicated region
      $region37: #{tpu_custom_call.1} parent=5 // pred_check
        %p943 = pneg %p942
      $region38: #{tpu_custom_call.1} parent=5 // pred_check_branch
        %945 = sbr.rel (%p943) target = $region40
      $region39: #{tpu_custom_call.1} parent=5 // pred_region
        %s946 = ssub.s32 %s13, 2
        // Predicated region
        $region41: #{tpu_custom_call.1} parent=39 // pred_check
          %p947 = pneg %p89
        $region42: #{tpu_custom_call.1} parent=39 // pred_check_branch
          %949 = sbr.rel (%p947) target = $region44
        $region43: #{tpu_custom_call.1} parent=39 // pred_region
          %s950 = smul.u32 32, %s19
          %p951 = scmp.lt.s32.totalorder %s950, 255
          %s952 = scalar_select %p951, %s950, 255
          %s953 = smul.addr %s952, 4
          %s954 = scalar_lea.vmem %s2, %s953
        $region44: #{tpu_custom_call.1} parent=39 // pred_fallthru
          _
        // Predicated region
        $region45: #{tpu_custom_call.1} parent=39 // pred_check
          %p955 = pneg %p115
        $region46: #{tpu_custom_call.1} parent=39 // pred_check_branch
          %957 = sbr.rel (%p955) target = $region48
        $region47: #{tpu_custom_call.1} parent=39 // pred_region
          %s958 = sand.u32 %s100, 1
          %s959 = scalar_lea.sflag [#allocation3], %s958
          %s960 = sand.u32 %s100, 1
          %s961 = smul.addr %s960, 2
          %s962 = scalar_lea.vmem [#allocation2], %s961
          %964 = dma.done %s959, 32
        $region48: #{tpu_custom_call.1} parent=39 // pred_fallthru
          _
      $region40: #{tpu_custom_call.1} parent=5 // pred_fallthru
        _
    $region6: #{tpu_custom_call.1} parent=1 // loop_footer
      %s17 = sadd.s32 1, %s13
    $region7: #{tpu_custom_call.1} parent=1 // loop_footer_branch
      %12 = sbr.rel target = $region3
    $region8: #{tpu_custom_call.1} parent=1 // loop_exit
      _
    %965 = vsyncpa [#allocation3], 1
    %s966 = scalar_lea.sflag [#allocation3], 1
    %967 = vsyncpa %s966, 1

</llo_original>
